<compile_context>
chip_gen: v7x
topology: tpu7x:2x2x1
jax: 0.10.0
libtpu: 0.0.40
codegen_flags: <defaults>
</compile_context>

<pallas_src>
import jax
import jax.numpy as jnp
from jax import lax
from jax.experimental import pallas as pl
from jax.experimental.pallas import tpu as pltpu


def _vmem_limit_bytes():
    """Generation-aware scoped-VMEM request: <= half of physical, <= 32 MiB."""
    try:
        cap = int(pltpu.get_tpu_info().vmem_capacity_bytes)
    except Exception:
        cap = 64 * 1024 * 1024          # conservative (v7x-sized) fallback
    return min(cap // 2, 32 * 1024 * 1024)


# ---------------------------------------------------------------------------
# Single-shot kernel: whole operands resident in VMEM (single buffer, grid=()).
# ---------------------------------------------------------------------------
def _diff_loss_single_kernel(d1_ref, d2_ref, out_ref):
    d1 = d1_ref[...]                                      # (B, F) native dtype
    d2 = d2_ref[...]
    d1f = d1.astype(jnp.float32)
    d2f = d2.astype(jnp.float32)
    ss1 = jnp.sum(d1f * d1f, axis=1, keepdims=True)       # (B, 1)
    ss2 = jnp.sum(d2f * d2f, axis=1, keepdims=True)
    g = lax.dot_general(                                  # (B, B) = D1 @ D2.T
        d1, d2,
        dimension_numbers=(((1,), (1,)), ((), ())),
        preferred_element_type=jnp.float32)
    n1 = jnp.sqrt(ss1) + 1e-6
    n2 = jnp.sqrt(ss2) + 1e-6
    m = g / (n1 * n2.T)
    out_ref[...] = jnp.mean(m * m).reshape(1, 1)


# ---------------------------------------------------------------------------
# Tiled, pipelined path: feature axis split over (2 cores) x (tiles per core).
# ---------------------------------------------------------------------------
def _diff_loss_tiled(d1, d2, tk, n_buf, vmem_limit):
    B, F = d1.shape
    NC = 2                                # feature range split across 2 TensorCores
    n_tiles = pl.cdiv(F, tk)
    tpc = pl.cdiv(n_tiles, NC)            # tiles per core
    # Mask whenever the (NC * tpc) tile cover exceeds F (ragged last tile
    # and/or one duplicated fully-masked trailing tile).
    mask_needed = (NC * tpc * tk != F)

    def in_idx(c, k):
        # Clamp so a padded trailing tile re-reads the last real tile; its
        # contribution is zeroed by the lane mask below.
        return (0, jnp.minimum(c * tpc + k, n_tiles - 1))

    def kernel(d1_ref, d2_ref, g_ref, ss1_ref, ss2_ref):
        c = pl.program_id(0)
        k = pl.program_id(1)

        @pl.when(k == 0)
        def _init():
            g_ref[...] = jnp.zeros_like(g_ref)
            ss1_ref[...] = jnp.zeros_like(ss1_ref)
            ss2_ref[...] = jnp.zeros_like(ss2_ref)

        d1t = d1_ref[...]                  # (B, tk) native dtype
        d2t = d2_ref[...]
        if mask_needed:                    # traced only when the cover is ragged
            start = (c * tpc + k) * tk
            lane = lax.broadcasted_iota(jnp.int32, (B, tk), 1)
            valid = lane < (F - start)
            d1t = jnp.where(valid, d1t, jnp.zeros_like(d1t))
            d2t = jnp.where(valid, d2t, jnp.zeros_like(d2t))

        d1f = d1t.astype(jnp.float32)
        d2f = d2t.astype(jnp.float32)

        # (B, 128) lane-partial sums of squares: pure VPU adds per step; the
        # cross-lane reduce / sqrt / +1e-6 are deferred to the JAX epilogue.
        sq1 = d1f * d1f
        sq2 = d2f * d2f
        p1 = sq1[:, 0:128]
        p2 = sq2[:, 0:128]
        for j in range(1, tk // 128):
            p1 = p1 + sq1[:, j * 128:(j + 1) * 128]
            p2 = p2 + sq2[:, j * 128:(j + 1) * 128]
        ss1_ref[...] += p1
        ss2_ref[...] += p2

        # Gram partial on the MXU (native dtype operands, f32 accumulation).
        # TODO(synk): VPU broadcast-multiply formulation for B <= 8.
        g_ref[...] += lax.dot_general(
            d1t, d2t,
            dimension_numbers=(((1,), (1,)), ((), ())),
            preferred_element_type=jnp.float32)

    spec_kwargs = {} if n_buf == 2 else {"pipeline_mode": pl.Buffered(n_buf)}
    in_specs = [pl.BlockSpec((B, tk), in_idx, **spec_kwargs),
                pl.BlockSpec((B, tk), in_idx, **spec_kwargs)]
    out_specs = (pl.BlockSpec((None, B, B), lambda c, k: (c, 0, 0)),
                 pl.BlockSpec((None, B, 128), lambda c, k: (c, 0, 0)),
                 pl.BlockSpec((None, B, 128), lambda c, k: (c, 0, 0)))
    out_shape = (jax.ShapeDtypeStruct((NC, B, B), jnp.float32),
                 jax.ShapeDtypeStruct((NC, B, 128), jnp.float32),
                 jax.ShapeDtypeStruct((NC, B, 128), jnp.float32))

    g_part, ss1_part, ss2_part = pl.pallas_call(
        kernel,
        out_shape=out_shape,
        grid=(NC, tpc),
        in_specs=in_specs,
        out_specs=out_specs,
        compiler_params=pltpu.CompilerParams(
            dimension_semantics=("parallel", "arbitrary"),
            vmem_limit_bytes=vmem_limit),
    )(d1, d2)

    # Tiny O(B^2) epilogue: add per-core halves, reduce the lane partials,
    # normalize and take the mean.
    g = jnp.sum(g_part, axis=0)                               # (B, B)
    n1 = jnp.sqrt(jnp.sum(ss1_part, axis=(0, 2))) + 1e-6      # (B,)
    n2 = jnp.sqrt(jnp.sum(ss2_part, axis=(0, 2))) + 1e-6      # (B,)
    m = g / (n1[:, None] * n2[None, :])
    return jnp.mean(m * m)


# ---------------------------------------------------------------------------
# Wrapper
# ---------------------------------------------------------------------------
def diff_loss(D1, D2, max_tile=None, force_tiled=False):
    """Pallas implementation of DiffLoss.forward(D1, D2).

    max_tile / force_tiled: optional overrides (used in tests to exercise the
    tiled + masked path on small shapes).
    """
    B = D1.shape[0]
    assert D2.shape[0] == B, "DiffLoss requires matching batch sizes"
    d1 = jnp.reshape(D1, (B, -1))       # keep native dtype (no HBM-doubling cast)
    d2 = jnp.reshape(D2, (B, -1))
    F = d1.shape[1]
    assert d2.shape[1] == F, "torch.mm requires matching flattened feature dims"
    if d1.dtype != d2.dtype:
        ct = jnp.promote_types(d1.dtype, d2.dtype)
        d1 = d1.astype(ct)
        d2 = d2.astype(ct)

    itemsize = jnp.dtype(d1.dtype).itemsize
    per_input_bytes = B * F * itemsize
    vmem_limit = _vmem_limit_bytes()

    if per_input_bytes <= (1 << 20) and not force_tiled:
        # Small problem: whole operands resident in VMEM, single buffer, no
        # grid -> no per-step overhead and no wasted double buffering.
        out = pl.pallas_call(
            _diff_loss_single_kernel,
            out_shape=jax.ShapeDtypeStruct((1, 1), jnp.float32),
            in_specs=[pl.BlockSpec(memory_space=pltpu.MemorySpace.VMEM),
                      pl.BlockSpec(memory_space=pltpu.MemorySpace.VMEM)],
            out_specs=pl.BlockSpec(memory_space=pltpu.MemorySpace.VMEM),
            compiler_params=pltpu.CompilerParams(vmem_limit_bytes=vmem_limit),
        )(d1, d2)
        return out[0, 0]

    # Tiled path: ~1 MiB per-input blocks, at least ~4 tiles when possible,
    # capped at 16384 lanes (bounds the unrolled lane-fold loop).
    tk_by_bytes = ((1 << 20) // (B * itemsize)) // 128 * 128
    tk_by_steps = pl.cdiv(pl.cdiv(F, 4), 128) * 128
    tk = max(128, min(tk_by_bytes, tk_by_steps, 16384))
    if max_tile is not None:
        tk = max(128, min(tk, (max_tile // 128) * 128))
    block_bytes = B * tk * itemsize
    n_buf = 3 if block_bytes < (512 * 1024) else 2   # deeper queue for tiny tiles
    return _diff_loss_tiled(d1, d2, tk, n_buf, vmem_limit)


def diff_loss_ref(D1, D2):
    """Pure-JAX reference mirroring the PyTorch forward exactly."""
    B = D1.shape[0]
    d1 = jnp.reshape(D1, (B, -1)).astype(jnp.float32)
    d2 = jnp.reshape(D2, (B, -1)).astype(jnp.float32)
    n1 = jnp.linalg.norm(d1, axis=1, keepdims=True)
    n2 = jnp.linalg.norm(d2, axis=1, keepdims=True)
    d1n = d1 / (n1 + 1e-6)
    d2n = d2 / (n2 + 1e-6)
    return jnp.mean((d1n @ d2n.T) ** 2)


if __name__ == "__main__":
    key = jax.random.PRNGKey(0)
    k1, k2 = jax.random.split(key)

    # Small NCHW feature maps (single-shot path: whole operands in VMEM).
    D1 = jax.random.normal(k1, (2, 4, 16, 16), dtype=jnp.float32)
    D2 = jax.random.normal(k2, (2, 4, 16, 16), dtype=jnp.float32)
    out = jax.block_until_ready(diff_loss(D1, D2))
    ref = diff_loss_ref(D1, D2)
    assert jnp.allclose(out, ref, rtol=1e-4, atol=1e-6), (out, ref)

    # Force the tiled + 2-core + masked-ragged-tile path on a small problem:
    # F = 1200, tk = 256 -> 5 real tiles (one ragged), one duplicated fully
    # masked tile on the second core, Buffered(3) input pipelining.
    D1b = jax.random.normal(k1, (4, 3, 20, 20), dtype=jnp.float32)
    D2b = jax.random.normal(k2, (4, 3, 20, 20), dtype=jnp.float32)
    out_b = jax.block_until_ready(
        diff_loss(D1b, D2b, max_tile=256, force_tiled=True))
    ref_b = diff_loss_ref(D1b, D2b)
    assert jnp.allclose(out_b, ref_b, rtol=1e-4, atol=1e-6), (out_b, ref_b)

    print("KERNEL_OK")
</pallas_src>

<mosaic_0001>
module attributes {stable_mosaic.version = 11 : i64} {
  func.func @_diff_loss_single_kernel(%arg0: memref<2x1024xf32, #tpu.memory_space<vmem>>, %arg1: memref<2x1024xf32, #tpu.memory_space<vmem>>, %arg2: memref<1x1xf32, #tpu.memory_space<vmem>>) attributes {dimension_semantics = [], scalar_prefetch = 0 : i64, scratch_operands = 0 : i64, tpu.core_type = #tpu.core_type<tc>} {
    %c0 = arith.constant 0 : index
    %c0_0 = arith.constant 0 : index
    %0 = vector.load %arg0[%c0, %c0_0] : memref<2x1024xf32, #tpu.memory_space<vmem>>, vector<2x1024xf32>
    %c0_1 = arith.constant 0 : index
    %c0_2 = arith.constant 0 : index
    %1 = vector.load %arg1[%c0_1, %c0_2] : memref<2x1024xf32, #tpu.memory_space<vmem>>, vector<2x1024xf32>
    %2 = arith.mulf %0, %0 : vector<2x1024xf32>
    %cst = arith.constant dense<0.000000e+00> : vector<2xf32>
    %3 = vector.multi_reduction <add>, %2, %cst [1] : vector<2x1024xf32> to vector<2xf32>
    %4 = vector.shape_cast %3 : vector<2xf32> to vector<2x1xf32>
    %5 = arith.mulf %1, %1 : vector<2x1024xf32>
    %cst_3 = arith.constant dense<0.000000e+00> : vector<2xf32>
    %6 = vector.multi_reduction <add>, %5, %cst_3 [1] : vector<2x1024xf32> to vector<2xf32>
    %7 = vector.shape_cast %6 : vector<2xf32> to vector<2x1xf32>
    %cst_4 = arith.constant dense<0.000000e+00> : vector<2x2xf32>
    %8 = tpu.matmul %0, %1, %cst_4 {dimension_numbers = #tpu.dot_dimension_numbers<[1], [1], [0], [0], [0, 0, 1, 0], [], []>} : vector<2x1024xf32>, vector<2x1024xf32>, vector<2x2xf32> -> vector<2x2xf32>
    %9 = math.sqrt %4 : vector<2x1xf32>
    %cst_5 = arith.constant 9.99999997E-7 : f32
    %10 = vector.broadcast %cst_5 : f32 to vector<2x1xf32>
    %11 = arith.addf %9, %10 : vector<2x1xf32>
    %12 = math.sqrt %7 : vector<2x1xf32>
    %cst_6 = arith.constant 9.99999997E-7 : f32
    %13 = vector.broadcast %cst_6 : f32 to vector<2x1xf32>
    %14 = arith.addf %12, %13 : vector<2x1xf32>
    %15 = tpu.transpose %14, [1, 0] : vector<2x1xf32> -> vector<1x2xf32>
    %16 = vector.broadcast %11 : vector<2x1xf32> to vector<2x2xf32>
    %17 = vector.broadcast %15 : vector<1x2xf32> to vector<2x2xf32>
    %18 = arith.mulf %16, %17 : vector<2x2xf32>
    %19 = arith.divf %8, %18 : vector<2x2xf32>
    %20 = arith.mulf %19, %19 : vector<2x2xf32>
    %21 = vector.shape_cast %20 : vector<2x2xf32> to vector<1x2x2xf32>
    %cst_7 = arith.constant dense<0.000000e+00> : vector<1xf32>
    %22 = vector.multi_reduction <add>, %21, %cst_7 [1, 2] : vector<1x2x2xf32> to vector<1xf32>
    %23 = vector.shape_cast %22 : vector<1xf32> to vector<1x1x1xf32>
    %24 = vector.extract %23[0, 0, 0] : f32 from vector<1x1x1xf32>
    %cst_8 = arith.constant 4.000000e+00 : f32
    %25 = arith.divf %24, %cst_8 : f32
    %26 = vector.broadcast %25 : f32 to vector<1x1xf32>
    %c0_9 = arith.constant 0 : index
    %c0_10 = arith.constant 0 : index
    %27 = vector.load %arg2[%c0_9, %c0_10] : memref<1x1xf32, #tpu.memory_space<vmem>>, vector<1x1xf32>
    tpu.vector_store %arg2[%c0_9, %c0_10], %26 {strides = array<i32>} : memref<1x1xf32, #tpu.memory_space<vmem>>, vector<1x1xf32>,
    return
  }
}

</mosaic_0001>

<llo_original>
// kernel: tpu_custom_call.1
$region0: #{tpu_custom_call.1}
  #allocation0 [shape = 'u32[]', space=smem, size = 0x4, offset = 0x4, fixed_abs, tag = 'smem constant byte address 0x4 - core index']
  #allocation1 [shape = 'u32[144,128]{1,0:T(1,128)}', space=vmem, size = 0x12000, scoped, tag = 'internal scratch']
  %s0 = inlined_call_operand.hbm [shape: f32[2,1024], index: 0, kind: input, shape index: {}]
  %s1 = inlined_call_operand.hbm [shape: f32[2,1024], index: 1, kind: input, shape index: {}]
  %s2 = inlined_call_operand.hbm [shape: f32[1,1], index: 2, kind: output, shape index: {}]
  %s3 = sld [smem:[#allocation0]]
  $region26: #{tpu_custom_call.1} parent=0
    _
  %s5 = ssub.s32 1, %s3
  %s6 = scalar_select 0, %s5, %s3
  $region1: #{tpu_custom_call.1} parent=0
    #allocation2 [shape = 'u8[8192]{0}', space=vmem, size = 0x2000, scoped, tag = 'input window, operand 0, single buffered']
    #allocation3 [shape = 's32[1]{0}', space=sflag, size = 0x4, scoped, tag = 'scoped memory for tpu_custom_call.1']
    #allocation4 [shape = 's32[1]{0}', space=sflag, size = 0x4, scoped, tag = 'scoped memory for tpu_custom_call.1']
    #allocation5 [shape = 'u8[8192]{0}', space=vmem, size = 0x2000, scoped, tag = 'input window, operand 1, single buffered']
    #allocation6 [shape = 's32[1]{0}', space=sflag, size = 0x4, scoped, tag = 'scoped memory for tpu_custom_call.1']
    #allocation7 [shape = 'u8[512]{0}', space=vmem, size = 0x400, scoped, tag = 'output window, operand 0, single buffered']
    %7 = vsyncpa [#allocation3], 0
    %8 = vsyncpa [#allocation6], 0
    %9 = vsyncpa [#allocation4], 0
    // Predicated region
    $region2: #{tpu_custom_call.1} parent=1 // pred_check
      _
    $region3: #{tpu_custom_call.1} parent=1 // pred_check_branch
      %11 = sbr.rel (0) target = $region5
    $region4: #{tpu_custom_call.1} parent=1 // pred_region
      %s13 = ssub.s32 256, 256
      %14 = vsyncadd [#allocation3], %s13
      %s16 = sshll.u32 [#allocation2], 4
      %s17 = int_to_ptr.vmem [resolvable:$true] %s16
      %19 = dma.hbm_to_vmem [thread:$0]  %s0, 256, %s17, [#allocation3]
    $region5: #{tpu_custom_call.1} parent=1 // pred_fallthru
      _
    // Predicated region
    $region6: #{tpu_custom_call.1} parent=1 // pred_check
      _
    $region7: #{tpu_custom_call.1} parent=1 // pred_check_branch
      %21 = sbr.rel (0) target = $region9
    $region8: #{tpu_custom_call.1} parent=1 // pred_region
      %s23 = ssub.s32 256, 256
      %24 = vsyncadd [#allocation6], %s23
      %s26 = sshll.u32 [#allocation5], 4
      %s27 = int_to_ptr.vmem [resolvable:$true] %s26
      %29 = dma.hbm_to_vmem [thread:$0]  %s1, 256, %s27, [#allocation6]
    $region9: #{tpu_custom_call.1} parent=1 // pred_fallthru
      _
    // Predicated region
    $region10: #{tpu_custom_call.1} parent=1 // pred_check
      _
    $region11: #{tpu_custom_call.1} parent=1 // pred_check_branch
      %31 = sbr.rel (0) target = $region13
    $region12: #{tpu_custom_call.1} parent=1 // pred_region
      %32 = dma.done [#allocation3], 256
    $region13: #{tpu_custom_call.1} parent=1 // pred_fallthru
      _
    // Predicated region
    $region14: #{tpu_custom_call.1} parent=1 // pred_check
      _
    $region15: #{tpu_custom_call.1} parent=1 // pred_check_branch
      %34 = sbr.rel (0) target = $region17
    $region16: #{tpu_custom_call.1} parent=1 // pred_region
      %35 = dma.done [#allocation6], 256
    $region17: #{tpu_custom_call.1} parent=1 // pred_fallthru
      _
    %v36 = vld [vmem:[#allocation2] sm:$0xff]
    %v37 = vld [vmem:[#allocation2 + $0x8] sm:$0xff]
    %v38 = vld [vmem:[#allocation5] sm:$0xff]
    %v39 = vld [vmem:[#allocation5 + $0x8] sm:$0xff]
    %v40 = vmul.f32 %v36, %v36
    %v41 = vmul.f32 %v37, %v37
    %v44 = vcombine.high %v40, %v40
    %v46 = vunpack.c.l.s4 1983009808
    %v47 = vunpack.c.0.s8 %v46
    %v48 = vlaneseq
    %v49 = vshrl.u32 %v48, 7
    %v50 = vsub.s32 %v47, %v49
    %v51 = vrot.slane %v40, %v50
    %v53 = vunpack.c.l.s4 1983009808
    %v54 = vunpack.c.0.s8 %v53
    %v55 = vlaneseq
    %v56 = vshrl.u32 %v55, 7
    %v57 = vsub.s32 %v54, %v56
    %v58 = vrot.slane %v44, %v57
    %v59 = vcombine.high %v51, %v51
    %v60 = vcombine.high %v58, %v58
    %v61 = vcombine.high %v41, %v41
    %v63 = vunpack.c.l.s4 1983009808
    %v64 = vunpack.c.0.s8 %v63
    %v65 = vlaneseq
    %v66 = vshrl.u32 %v65, 7
    %v67 = vsub.s32 %v64, %v66
    %v68 = vrot.slane %v41, %v67
    %v70 = vunpack.c.l.s4 1983009808
    %v71 = vunpack.c.0.s8 %v70
    %v72 = vlaneseq
    %v73 = vshrl.u32 %v72, 7
    %v74 = vsub.s32 %v71, %v73
    %v75 = vrot.slane %v61, %v74
    %v76 = vcombine.high %v68, %v68
    %v77 = vcombine.high %v75, %v75
    %vm86 = vcmask 1041408
    %v87 = vsel %vm86, %v51, 0.0
    %v88 = vsel %vm86, %v59, 0.0
    %v89 = vadd.f32 %v87, %v88
    %v90 = vsel %vm86, %v58, 0.0
    %v91 = vadd.f32 %v89, %v90
    %v92 = vsel %vm86, %v60, 0.0
    %v93 = vadd.f32 %v91, %v92
    %v94 = vsel %vm86, %v68, 0.0
    %v95 = vadd.f32 %v93, %v94
    %v96 = vsel %vm86, %v76, 0.0
    %v97 = vadd.f32 %v95, %v96
    %v98 = vsel %vm86, %v75, 0.0
    %v99 = vadd.f32 %v97, %v98
    %v100 = vsel %vm86, %v77, 0.0
    %v101 = vadd.f32 %v99, %v100
    %102 = vadd.xlane.f32.xlu0 %v101
    %v103 = vpop.xlane.xlu0 %102
    %v104 = vmul.f32 %v38, %v38
    %v105 = vmul.f32 %v39, %v39
    %v108 = vcombine.high %v104, %v104
    %v110 = vunpack.c.l.s4 1983009808
    %v111 = vunpack.c.0.s8 %v110
    %v112 = vlaneseq
    %v113 = vshrl.u32 %v112, 7
    %v114 = vsub.s32 %v111, %v113
    %v115 = vrot.slane %v104, %v114
    %v117 = vunpack.c.l.s4 1983009808
    %v118 = vunpack.c.0.s8 %v117
    %v119 = vlaneseq
    %v120 = vshrl.u32 %v119, 7
    %v121 = vsub.s32 %v118, %v120
    %v122 = vrot.slane %v108, %v121
    %v123 = vcombine.high %v115, %v115
    %v124 = vcombine.high %v122, %v122
    %v125 = vcombine.high %v105, %v105
    %v127 = vunpack.c.l.s4 1983009808
    %v128 = vunpack.c.0.s8 %v127
    %v129 = vlaneseq
    %v130 = vshrl.u32 %v129, 7
    %v131 = vsub.s32 %v128, %v130
    %v132 = vrot.slane %v105, %v131
    %v134 = vunpack.c.l.s4 1983009808
    %v135 = vunpack.c.0.s8 %v134
    %v136 = vlaneseq
    %v137 = vshrl.u32 %v136, 7
    %v138 = vsub.s32 %v135, %v137
    %v139 = vrot.slane %v125, %v138
    %v140 = vcombine.high %v132, %v132
    %v141 = vcombine.high %v139, %v139
    %v150 = vsel %vm86, %v115, 0.0
    %v151 = vsel %vm86, %v123, 0.0
    %v152 = vadd.f32 %v150, %v151
    %v153 = vsel %vm86, %v122, 0.0
    %v154 = vadd.f32 %v152, %v153
    %v155 = vsel %vm86, %v124, 0.0
    %v156 = vadd.f32 %v154, %v155
    %v157 = vsel %vm86, %v132, 0.0
    %v158 = vadd.f32 %v156, %v157
    %v159 = vsel %vm86, %v140, 0.0
    %v160 = vadd.f32 %v158, %v159
    %v161 = vsel %vm86, %v139, 0.0
    %v162 = vadd.f32 %v160, %v161
    %v163 = vsel %vm86, %v141, 0.0
    %v164 = vadd.f32 %v162, %v163
    %165 = vadd.xlane.f32.xlu0 %v164
    %v166 = vpop.xlane.xlu0 %165
    %v169 = vcombine.high %v36, %v36
    %v171 = vunpack.c.l.s4 1983009808
    %v172 = vunpack.c.0.s8 %v171
    %v173 = vlaneseq
    %v174 = vshrl.u32 %v173, 7
    %v175 = vsub.s32 %v172, %v174
    %v176 = vrot.slane %v36, %v175
    %v178 = vunpack.c.l.s4 1983009808
    %v179 = vunpack.c.0.s8 %v178
    %v180 = vlaneseq
    %v181 = vshrl.u32 %v180, 7
    %v182 = vsub.s32 %v179, %v181
    %v183 = vrot.slane %v169, %v182
    %v184 = vcombine.high %v176, %v176
    %v185 = vcombine.high %v183, %v183
    %v186 = vcombine.high %v37, %v37
    %v188 = vunpack.c.l.s4 1983009808
    %v189 = vunpack.c.0.s8 %v188
    %v190 = vlaneseq
    %v191 = vshrl.u32 %v190, 7
    %v192 = vsub.s32 %v189, %v191
    %v193 = vrot.slane %v37, %v192
    %v195 = vunpack.c.l.s4 1983009808
    %v196 = vunpack.c.0.s8 %v195
    %v197 = vlaneseq
    %v198 = vshrl.u32 %v197, 7
    %v199 = vsub.s32 %v196, %v198
    %v200 = vrot.slane %v186, %v199
    %v201 = vcombine.high %v193, %v193
    %v202 = vcombine.high %v200, %v200
    %v213 = vcombine.high %v38, %v38
    %v215 = vunpack.c.l.s4 1983009808
    %v216 = vunpack.c.0.s8 %v215
    %v217 = vlaneseq
    %v218 = vshrl.u32 %v217, 7
    %v219 = vsub.s32 %v216, %v218
    %v220 = vrot.slane %v38, %v219
    %v222 = vunpack.c.l.s4 1983009808
    %v223 = vunpack.c.0.s8 %v222
    %v224 = vlaneseq
    %v225 = vshrl.u32 %v224, 7
    %v226 = vsub.s32 %v223, %v225
    %v227 = vrot.slane %v213, %v226
    %v228 = vcombine.high %v220, %v220
    %v229 = vcombine.high %v227, %v227
    %v230 = vcombine.high %v39, %v39
    %v232 = vunpack.c.l.s4 1983009808
    %v233 = vunpack.c.0.s8 %v232
    %v234 = vlaneseq
    %v235 = vshrl.u32 %v234, 7
    %v236 = vsub.s32 %v233, %v235
    %v237 = vrot.slane %v39, %v236
    %v239 = vunpack.c.l.s4 1983009808
    %v240 = vunpack.c.0.s8 %v239
    %v241 = vlaneseq
    %v242 = vshrl.u32 %v241, 7
    %v243 = vsub.s32 %v240, %v242
    %v244 = vrot.slane %v230, %v243
    %v245 = vcombine.high %v237, %v237
    %v246 = vcombine.high %v244, %v244
    %255 = vmatprep.subr.mxu0 %v228
    %256 = vmatpush1.xpose.msra.mxu0 %v220
    %257 = vmatprep.subr.mxu0 0.0
    %258 = vmatpush1.xpose.msra.mxu0 0.0
    %259 = vmatprep.subr.mxu0 0.0
    %260 = vmatpush1.xpose.msra.mxu0 0.0
    %261 = vmatprep.subr.mxu0 0.0
    %262 = vmatpush1.xpose.msra.mxu0 0.0
    %263 = vmatprep.subr.mxu0 0.0
    %264 = vmatpush1.xpose.msra.mxu0 0.0
    %265 = vmatprep.subr.mxu0 0.0
    %266 = vmatpush1.xpose.msra.mxu0 0.0
    %267 = vmatprep.subr.mxu0 0.0
    %268 = vmatpush1.xpose.msra.mxu0 0.0
    %269 = vmatprep.subr.mxu0 0.0
    %270 = vmatpush1.xpose.msra.mxu0 0.0
    %271 = vmatprep.subr.mxu0 0.0
    %272 = vmatpush1.xpose.msra.mxu0 0.0
    %273 = vmatprep.subr.mxu0 0.0
    %274 = vmatpush1.xpose.msra.mxu0 0.0
    %275 = vmatprep.subr.mxu0 0.0
    %276 = vmatpush1.xpose.msra.mxu0 0.0
    %277 = vmatprep.subr.mxu0 0.0
    %278 = vmatpush1.xpose.msra.mxu0 0.0
    %279 = vmatprep.subr.mxu0 0.0
    %280 = vmatpush1.xpose.msra.mxu0 0.0
    %281 = vmatprep.subr.mxu0 0.0
    %282 = vmatpush1.xpose.msra.mxu0 0.0
    %283 = vmatprep.subr.mxu0 0.0
    %284 = vmatpush1.xpose.msra.mxu0 0.0
    %285 = vmatprep.subr.mxu0 0.0
    %286 = vmatpush1.xpose.msra.mxu0 0.0
    %287 = vmatprep.subr.mxu0 0.0
    %288 = vmatpush1.xpose.msra.mxu0 0.0
    %289 = vmatprep.subr.mxu0 0.0
    %290 = vmatpush1.xpose.msra.mxu0 0.0
    %291 = vmatprep.subr.mxu0 0.0
    %292 = vmatpush1.xpose.msra.mxu0 0.0
    %293 = vmatprep.subr.mxu0 0.0
    %294 = vmatpush1.xpose.msra.mxu0 0.0
    %295 = vmatprep.subr.mxu0 0.0
    %296 = vmatpush1.xpose.msra.mxu0 0.0
    %297 = vmatprep.subr.mxu0 0.0
    %298 = vmatpush1.xpose.msra.mxu0 0.0
    %299 = vmatprep.subr.mxu0 0.0
    %300 = vmatpush1.xpose.msra.mxu0 0.0
    %301 = vmatprep.subr.mxu0 0.0
    %302 = vmatpush1.xpose.msra.mxu0 0.0
    %303 = vmatprep.subr.mxu0 0.0
    %304 = vmatpush1.xpose.msra.mxu0 0.0
    %305 = vmatprep.subr.mxu0 0.0
    %306 = vmatpush1.xpose.msra.mxu0 0.0
    %307 = vmatprep.subr.mxu0 0.0
    %308 = vmatpush1.xpose.msra.mxu0 0.0
    %309 = vmatprep.subr.mxu0 0.0
    %310 = vmatpush1.xpose.msra.mxu0 0.0
    %311 = vmatprep.subr.mxu0 0.0
    %312 = vmatpush1.xpose.msra.mxu0 0.0
    %313 = vmatprep.subr.mxu0 0.0
    %314 = vmatpush1.xpose.msra.mxu0 0.0
    %315 = vmatprep.subr.mxu0 0.0
    %316 = vmatpush1.xpose.msra.mxu0 0.0
    %317 = vmatprep.subr.mxu0 0.0
    %318 = vmatpush1.xpose.msra.mxu0 0.0
    %319 = vmatprep.mubr.f32.mxu0 %v184
    %320 = vmatmul.mubr.f32.gmra.mrb[0].mxu0 %v176
    %v321 = vpop.f32.mrb[0].mxu0
    %v322 = vadd.f32 0.0, %v321
    %v323 = vpop.f32.mrb[0].mxu0
    %324 = vdwg.mxu0
    %325 = vmatprep.subr.mxu0 %v229
    %326 = vmatpush1.xpose.msra.mxu0 %v227
    %327 = vmatprep.subr.mxu0 0.0
    %328 = vmatpush1.xpose.msra.mxu0 0.0
    %329 = vmatprep.subr.mxu0 0.0
    %330 = vmatpush1.xpose.msra.mxu0 0.0
    %331 = vmatprep.subr.mxu0 0.0
    %332 = vmatpush1.xpose.msra.mxu0 0.0
    %333 = vmatprep.subr.mxu0 0.0
    %334 = vmatpush1.xpose.msra.mxu0 0.0
    %335 = vmatprep.subr.mxu0 0.0
    %336 = vmatpush1.xpose.msra.mxu0 0.0
    %337 = vmatprep.subr.mxu0 0.0
    %338 = vmatpush1.xpose.msra.mxu0 0.0
    %339 = vmatprep.subr.mxu0 0.0
    %340 = vmatpush1.xpose.msra.mxu0 0.0
    %341 = vmatprep.subr.mxu0 0.0
    %342 = vmatpush1.xpose.msra.mxu0 0.0
    %343 = vmatprep.subr.mxu0 0.0
    %344 = vmatpush1.xpose.msra.mxu0 0.0
    %345 = vmatprep.subr.mxu0 0.0
    %346 = vmatpush1.xpose.msra.mxu0 0.0
    %347 = vmatprep.subr.mxu0 0.0
    %348 = vmatpush1.xpose.msra.mxu0 0.0
    %349 = vmatprep.subr.mxu0 0.0
    %350 = vmatpush1.xpose.msra.mxu0 0.0
    %351 = vmatprep.subr.mxu0 0.0
    %352 = vmatpush1.xpose.msra.mxu0 0.0
    %353 = vmatprep.subr.mxu0 0.0
    %354 = vmatpush1.xpose.msra.mxu0 0.0
    %355 = vmatprep.subr.mxu0 0.0
    %356 = vmatpush1.xpose.msra.mxu0 0.0
    %357 = vmatprep.subr.mxu0 0.0
    %358 = vmatpush1.xpose.msra.mxu0 0.0
    %359 = vmatprep.subr.mxu0 0.0
    %360 = vmatpush1.xpose.msra.mxu0 0.0
    %361 = vmatprep.subr.mxu0 0.0
    %362 = vmatpush1.xpose.msra.mxu0 0.0
    %363 = vmatprep.subr.mxu0 0.0
    %364 = vmatpush1.xpose.msra.mxu0 0.0
    %365 = vmatprep.subr.mxu0 0.0
    %366 = vmatpush1.xpose.msra.mxu0 0.0
    %367 = vmatprep.subr.mxu0 0.0
    %368 = vmatpush1.xpose.msra.mxu0 0.0
    %369 = vmatprep.subr.mxu0 0.0
    %370 = vmatpush1.xpose.msra.mxu0 0.0
    %371 = vmatprep.subr.mxu0 0.0
    %372 = vmatpush1.xpose.msra.mxu0 0.0
    %373 = vmatprep.subr.mxu0 0.0
    %374 = vmatpush1.xpose.msra.mxu0 0.0
    %375 = vmatprep.subr.mxu0 0.0
    %376 = vmatpush1.xpose.msra.mxu0 0.0
    %377 = vmatprep.subr.mxu0 0.0
    %378 = vmatpush1.xpose.msra.mxu0 0.0
    %379 = vmatprep.subr.mxu0 0.0
    %380 = vmatpush1.xpose.msra.mxu0 0.0
    %381 = vmatprep.subr.mxu0 0.0
    %382 = vmatpush1.xpose.msra.mxu0 0.0
    %383 = vmatprep.subr.mxu0 0.0
    %384 = vmatpush1.xpose.msra.mxu0 0.0
    %385 = vmatprep.subr.mxu0 0.0
    %386 = vmatpush1.xpose.msra.mxu0 0.0
    %387 = vmatprep.subr.mxu0 0.0
    %388 = vmatpush1.xpose.msra.mxu0 0.0
    %389 = vmatprep.mubr.f32.mxu0 %v185
    %390 = vmatmul.mubr.f32.gmra.mrb[0].mxu0 %v183
    %v391 = vpop.f32.mrb[0].mxu0
    %v392 = vadd.f32 %v322, %v391
    %v393 = vpop.f32.mrb[0].mxu0
    %394 = vdwg.mxu0
    %395 = vmatprep.subr.mxu0 %v245
    %396 = vmatpush1.xpose.msra.mxu0 %v237
    %397 = vmatprep.subr.mxu0 0.0
    %398 = vmatpush1.xpose.msra.mxu0 0.0
    %399 = vmatprep.subr.mxu0 0.0
    %400 = vmatpush1.xpose.msra.mxu0 0.0
    %401 = vmatprep.subr.mxu0 0.0
    %402 = vmatpush1.xpose.msra.mxu0 0.0
    %403 = vmatprep.subr.mxu0 0.0
    %404 = vmatpush1.xpose.msra.mxu0 0.0
    %405 = vmatprep.subr.mxu0 0.0
    %406 = vmatpush1.xpose.msra.mxu0 0.0
    %407 = vmatprep.subr.mxu0 0.0
    %408 = vmatpush1.xpose.msra.mxu0 0.0
    %409 = vmatprep.subr.mxu0 0.0
    %410 = vmatpush1.xpose.msra.mxu0 0.0
    %411 = vmatprep.subr.mxu0 0.0
    %412 = vmatpush1.xpose.msra.mxu0 0.0
    %413 = vmatprep.subr.mxu0 0.0
    %414 = vmatpush1.xpose.msra.mxu0 0.0
    %415 = vmatprep.subr.mxu0 0.0
    %416 = vmatpush1.xpose.msra.mxu0 0.0
    %417 = vmatprep.subr.mxu0 0.0
    %418 = vmatpush1.xpose.msra.mxu0 0.0
    %419 = vmatprep.subr.mxu0 0.0
    %420 = vmatpush1.xpose.msra.mxu0 0.0
    %421 = vmatprep.subr.mxu0 0.0
    %422 = vmatpush1.xpose.msra.mxu0 0.0
    %423 = vmatprep.subr.mxu0 0.0
    %424 = vmatpush1.xpose.msra.mxu0 0.0
    %425 = vmatprep.subr.mxu0 0.0
    %426 = vmatpush1.xpose.msra.mxu0 0.0
    %427 = vmatprep.subr.mxu0 0.0
    %428 = vmatpush1.xpose.msra.mxu0 0.0
    %429 = vmatprep.subr.mxu0 0.0
    %430 = vmatpush1.xpose.msra.mxu0 0.0
    %431 = vmatprep.subr.mxu0 0.0
    %432 = vmatpush1.xpose.msra.mxu0 0.0
    %433 = vmatprep.subr.mxu0 0.0
    %434 = vmatpush1.xpose.msra.mxu0 0.0
    %435 = vmatprep.subr.mxu0 0.0
    %436 = vmatpush1.xpose.msra.mxu0 0.0
    %437 = vmatprep.subr.mxu0 0.0
    %438 = vmatpush1.xpose.msra.mxu0 0.0
    %439 = vmatprep.subr.mxu0 0.0
    %440 = vmatpush1.xpose.msra.mxu0 0.0
    %441 = vmatprep.subr.mxu0 0.0
    %442 = vmatpush1.xpose.msra.mxu0 0.0
    %443 = vmatprep.subr.mxu0 0.0
    %444 = vmatpush1.xpose.msra.mxu0 0.0
    %445 = vmatprep.subr.mxu0 0.0
    %446 = vmatpush1.xpose.msra.mxu0 0.0
    %447 = vmatprep.subr.mxu0 0.0
    %448 = vmatpush1.xpose.msra.mxu0 0.0
    %449 = vmatprep.subr.mxu0 0.0
    %450 = vmatpush1.xpose.msra.mxu0 0.0
    %451 = vmatprep.subr.mxu0 0.0
    %452 = vmatpush1.xpose.msra.mxu0 0.0
    %453 = vmatprep.subr.mxu0 0.0
    %454 = vmatpush1.xpose.msra.mxu0 0.0
    %455 = vmatprep.subr.mxu0 0.0
    %456 = vmatpush1.xpose.msra.mxu0 0.0
    %457 = vmatprep.subr.mxu0 0.0
    %458 = vmatpush1.xpose.msra.mxu0 0.0
    %459 = vmatprep.mubr.f32.mxu0 %v201
    %460 = vmatmul.mubr.f32.gmra.mrb[0].mxu0 %v193
    %v461 = vpop.f32.mrb[0].mxu0
    %v462 = vadd.f32 %v392, %v461
    %v463 = vpop.f32.mrb[0].mxu0
    %464 = vdwg.mxu0
    %465 = vmatprep.subr.mxu0 %v246
    %466 = vmatpush1.xpose.msra.mxu0 %v244
    %467 = vmatprep.subr.mxu0 0.0
    %468 = vmatpush1.xpose.msra.mxu0 0.0
    %469 = vmatprep.subr.mxu0 0.0
    %470 = vmatpush1.xpose.msra.mxu0 0.0
    %471 = vmatprep.subr.mxu0 0.0
    %472 = vmatpush1.xpose.msra.mxu0 0.0
    %473 = vmatprep.subr.mxu0 0.0
    %474 = vmatpush1.xpose.msra.mxu0 0.0
    %475 = vmatprep.subr.mxu0 0.0
    %476 = vmatpush1.xpose.msra.mxu0 0.0
    %477 = vmatprep.subr.mxu0 0.0
    %478 = vmatpush1.xpose.msra.mxu0 0.0
    %479 = vmatprep.subr.mxu0 0.0
    %480 = vmatpush1.xpose.msra.mxu0 0.0
    %481 = vmatprep.subr.mxu0 0.0
    %482 = vmatpush1.xpose.msra.mxu0 0.0
    %483 = vmatprep.subr.mxu0 0.0
    %484 = vmatpush1.xpose.msra.mxu0 0.0
    %485 = vmatprep.subr.mxu0 0.0
    %486 = vmatpush1.xpose.msra.mxu0 0.0
    %487 = vmatprep.subr.mxu0 0.0
    %488 = vmatpush1.xpose.msra.mxu0 0.0
    %489 = vmatprep.subr.mxu0 0.0
    %490 = vmatpush1.xpose.msra.mxu0 0.0
    %491 = vmatprep.subr.mxu0 0.0
    %492 = vmatpush1.xpose.msra.mxu0 0.0
    %493 = vmatprep.subr.mxu0 0.0
    %494 = vmatpush1.xpose.msra.mxu0 0.0
    %495 = vmatprep.subr.mxu0 0.0
    %496 = vmatpush1.xpose.msra.mxu0 0.0
    %497 = vmatprep.subr.mxu0 0.0
    %498 = vmatpush1.xpose.msra.mxu0 0.0
    %499 = vmatprep.subr.mxu0 0.0
    %500 = vmatpush1.xpose.msra.mxu0 0.0
    %501 = vmatprep.subr.mxu0 0.0
    %502 = vmatpush1.xpose.msra.mxu0 0.0
    %503 = vmatprep.subr.mxu0 0.0
    %504 = vmatpush1.xpose.msra.mxu0 0.0
    %505 = vmatprep.subr.mxu0 0.0
    %506 = vmatpush1.xpose.msra.mxu0 0.0
    %507 = vmatprep.subr.mxu0 0.0
    %508 = vmatpush1.xpose.msra.mxu0 0.0
    %509 = vmatprep.subr.mxu0 0.0
    %510 = vmatpush1.xpose.msra.mxu0 0.0
    %511 = vmatprep.subr.mxu0 0.0
    %512 = vmatpush1.xpose.msra.mxu0 0.0
    %513 = vmatprep.subr.mxu0 0.0
    %514 = vmatpush1.xpose.msra.mxu0 0.0
    %515 = vmatprep.subr.mxu0 0.0
    %516 = vmatpush1.xpose.msra.mxu0 0.0
    %517 = vmatprep.subr.mxu0 0.0
    %518 = vmatpush1.xpose.msra.mxu0 0.0
    %519 = vmatprep.subr.mxu0 0.0
    %520 = vmatpush1.xpose.msra.mxu0 0.0
    %521 = vmatprep.subr.mxu0 0.0
    %522 = vmatpush1.xpose.msra.mxu0 0.0
    %523 = vmatprep.subr.mxu0 0.0
    %524 = vmatpush1.xpose.msra.mxu0 0.0
    %525 = vmatprep.subr.mxu0 0.0
    %526 = vmatpush1.xpose.msra.mxu0 0.0
    %527 = vmatprep.subr.mxu0 0.0
    %528 = vmatpush1.xpose.msra.mxu0 0.0
    %529 = vmatprep.mubr.f32.mxu0 %v202
    %530 = vmatmul.mubr.f32.gmra.mrb[0].mxu0 %v200
    %v531 = vpop.f32.mrb[0].mxu0
    %v532 = vadd.f32 %v462, %v531
    %v533 = vpop.f32.mrb[0].mxu0
    %534 = vdwg.mxu0
    %v535 = vrsqrt.pop %v103
    %v536 = vmul.f32 %v103, %v535
    %vm537 = vcmp.eq.f32.partialorder %v103, inf
    %v538 = vsel %vm537, %v103, %v536
    %vm539 = vcmp.eq.f32.partialorder %v103, 0.0
    %v540 = vand.u32 %v103, 2147483648
    %v541 = vsel %vm539, %v540, %v538
    %v542 = vadd.f32 %v541, 1e-06
    %v543 = vrsqrt.pop %v166
    %v544 = vmul.f32 %v166, %v543
    %vm545 = vcmp.eq.f32.partialorder %v166, inf
    %v546 = vsel %vm545, %v166, %v544
    %vm547 = vcmp.eq.f32.partialorder %v166, 0.0
    %v548 = vand.u32 %v166, 2147483648
    %v549 = vsel %vm547, %v548, %v546
    %v550 = vadd.f32 %v549, 1e-06
    %551 = vxpose.xlu0.b32.start [1/16] %v550, 128
    %552 = vxpose.xlu0.b32.cont [2/16] 0.0, 128
    %553 = vxpose.xlu0.b32.cont [3/16] 0.0, 128
    %554 = vxpose.xlu0.b32.cont [4/16] 0.0, 128
    %555 = vxpose.xlu0.b32.cont [5/16] 0.0, 128
    %556 = vxpose.xlu0.b32.cont [6/16] 0.0, 128
    %557 = vxpose.xlu0.b32.cont [7/16] 0.0, 128
    %558 = vxpose.xlu0.b32.cont [8/16] 0.0, 128
    %559 = vxpose.xlu0.b32.cont [9/16] 0.0, 128
    %560 = vxpose.xlu0.b32.cont [10/16] 0.0, 128
    %561 = vxpose.xlu0.b32.cont [11/16] 0.0, 128
    %562 = vxpose.xlu0.b32.cont [12/16] 0.0, 128
    %563 = vxpose.xlu0.b32.cont [13/16] 0.0, 128
    %564 = vxpose.xlu0.b32.cont [14/16] 0.0, 128
    %565 = vxpose.xlu0.b32.cont [15/16] 0.0, 128
    %566 = vxpose.xlu0.b32.end [16/16] 0.0, 128
    %v567 = vpop.trf.xlu0
    %v568 = vpop.trf.xlu0
    %v569 = vpop.trf.xlu0
    %v570 = vpop.trf.xlu0
    %v571 = vpop.trf.xlu0
    %v572 = vpop.trf.xlu0
    %v573 = vpop.trf.xlu0
    %v574 = vpop.trf.xlu0
    %v575 = vpop.trf.xlu0
    %v576 = vpop.trf.xlu0
    %v577 = vpop.trf.xlu0
    %v578 = vpop.trf.xlu0
    %v579 = vpop.trf.xlu0
    %v580 = vpop.trf.xlu0
    %v581 = vpop.trf.xlu0
    %v582 = vpop.trf.xlu0
    %v583 = vlaneseq
    %v584 = vshrl.u32 %v583, 7
    %v585 = vsub.s32 0, %v584
    %v586 = vrot.slane %v567, %v585
    %v587 = vmul.f32 %v542, %v586
    %v588 = vrcp.pop %v587
    %v589 = vmul.f32 %v532, %v588
    %v590 = vmul.f32 %v589, %v589
    %vm591 = vcmask 9216
    %v592 = vsel %vm591, %v590, 0.0
    %593 = vadd.xlane.f32.xlu0 %v592
    %v594 = vpop.xlane.xlu0 %593
    %v595 = vrot.slane %v594, 4
    %v596 = vadd.f32 %v594, %v595
    %v597 = vrot.slane %v596, 2
    %v598 = vadd.f32 %v596, %v597
    %v599 = vrot.slane %v598, 1
    %v600 = vadd.f32 %v598, %v599
    %s601 = vtos %v600
    %v602 = vrcp.pop 4.0
    %s603 = vtos %v602
    %s604 = smul.f32 %s601, %s603
    %v605 = vstv %s604
    %vm606 = vcmask 0
    %607 = vst.msk [vmem:[#allocation7] sm:$0x1] %vm606, %v605
    // Predicated region
    $region18: #{tpu_custom_call.1} parent=1 // pred_check
      _
    $region19: #{tpu_custom_call.1} parent=1 // pred_check_branch
      %609 = sbr.rel (0) target = $region21
    $region20: #{tpu_custom_call.1} parent=1 // pred_region
      %s611 = ssub.s32 16, 16
      %612 = vsyncadd [#allocation4], %s611
      %s614 = sshll.u32 [#allocation7], 4
      %s615 = int_to_ptr.vmem [resolvable:$true] %s614
      %617 = dma.vmem_to_hbm [thread:$0]  %s615, 16, %s2, [#allocation4]
    $region21: #{tpu_custom_call.1} parent=1 // pred_fallthru
      _
    // Predicated region
    $region22: #{tpu_custom_call.1} parent=1 // pred_check
      _
    $region23: #{tpu_custom_call.1} parent=1 // pred_check_branch
      %619 = sbr.rel (0) target = $region25
    $region24: #{tpu_custom_call.1} parent=1 // pred_region
      %620 = dma.done [#allocation4], 16
    $region25: #{tpu_custom_call.1} parent=1 // pred_fallthru
      _
    %621 = vsyncpa [#allocation3], 1
    %622 = vsyncpa [#allocation6], 1
    %623 = vsyncpa [#allocation4], 1

</llo_original>
